<compile_context>
chip_gen: v5e
topology: v5e:2x2
jax: 0.10.0
libtpu: 0.0.40
codegen_flags: <defaults>
</compile_context>

<pallas_src>
import jax
import jax.numpy as jnp
import numpy as np
from jax.experimental import pallas as pl
from jax.experimental.pallas import tpu as pltpu


def _round_up(n, m):
    return ((n + m - 1) // m) * m


def _make_kernel(*, fold, have_noise, batch_actual, tb, K, H, P_pad):
    def kernel(*refs):
        if fold:
            if have_noise:
                x_ref, wbig_ref, bbig_ref, wp_ref, noise_ref, out_ref, loss_ref = refs
            else:
                x_ref, wbig_ref, bbig_ref, out_ref, loss_ref = refs
            # One wide matmul: columns [0:P_pad) already went through w_pred
            # (folded in the wrapper) -> preds; columns [P_pad:P_pad+H) = hidden.
            # P_pad is a multiple of 128, so both slices are lane-tile aligned.
            y = jnp.dot(x_ref[...], wbig_ref[...],
                        preferred_element_type=jnp.float32) + bbig_ref[...]
            preds = y[:, :P_pad]
            hidden = y[:, P_pad:P_pad + H]
            if have_noise:
                # predictor is affine: predictor(hidden + n) = preds + n @ w_pred
                delta = jnp.dot(noise_ref[...].reshape(K * tb, H), wp_ref[...],
                                preferred_element_type=jnp.float32)
        else:
            if have_noise:
                x_ref, wc_ref, bc_ref, wp_ref, bp_ref, noise_ref, out_ref, loss_ref = refs
            else:
                x_ref, wc_ref, bc_ref, wp_ref, bp_ref, out_ref, loss_ref = refs
            hidden = jnp.dot(x_ref[...], wc_ref[...],
                             preferred_element_type=jnp.float32) + bc_ref[...]
            if have_noise:
                # merge the two w_pred matmuls into a single MXU launch
                lhs = jnp.concatenate(
                    [hidden.astype(wp_ref.dtype),
                     noise_ref[...].reshape(K * tb, H)], axis=0)
                yy = jnp.dot(lhs, wp_ref[...],
                             preferred_element_type=jnp.float32)
                preds = yy[:tb] + bp_ref[...]
                delta = yy[tb:]
            else:
                preds = jnp.dot(hidden.astype(wp_ref.dtype), wp_ref[...],
                                preferred_element_type=jnp.float32) + bp_ref[...]

        # masked partial L1(hidden) for this batch tile (pad rows excluded);
        # written into a single (8,128) sublane tile, not broadcast over tb rows
        row = (jax.lax.broadcasted_iota(jnp.int32, (tb, 1), 0)
               + pl.program_id(0) * tb)
        mask = (row < batch_actual).astype(jnp.float32)
        loss_ref[...] = jnp.full(loss_ref.shape,
                                 jnp.sum(jnp.abs(hidden) * mask), jnp.float32)

        # direct, lane-dense slice stores (no in-kernel concatenate slab)
        out_ref[0, 0] = preds
        if have_noise:
            for k in range(K):
                out_ref[k + 1, 0] = preds + delta[k * tb:(k + 1) * tb]

    return kernel


def noise_amp_forward(x, params, output_len, target_dim, noise=None):
    """Forward pass.  `noise` is the precomputed analogue of
    np.random.choice([-1, 1], (K, B, out_dim)) * noise_sig[0]; pass None for the
    noise_sig=None branch (compiles a noise-free kernel variant).
    Returns (preds, preds_noi_or_None, loss_reg)."""
    B, C, T = x.shape
    w_enc = params["w_enc"].astype(jnp.float32)
    b_enc = params["b_enc"].astype(jnp.float32)
    w_proj = params["w_proj"].astype(jnp.float32)
    b_proj = params["b_proj"].astype(jnp.float32)
    w_pred = params["w_pred"].astype(jnp.float32)
    b_pred = params["b_pred"].astype(jnp.float32)

    E = w_enc.shape[1]
    H = w_proj.shape[1]
    P = w_pred.shape[1]
    assert P == output_len * target_dim
    CT = C * T

    have_noise = noise is not None
    K = int(noise.shape[0]) if have_noise else 0

    # Fold encoder into the projector: hidden = x_flat @ w_comb + b_comb
    # (rows of the flattened state are ordered (channel, enc_feature)).
    w_proj3 = w_proj.reshape(C, E, H)
    w_comb = jnp.einsum("te,ceh->cth", w_enc, w_proj3).reshape(CT, H)
    b_comb = b_proj + jnp.einsum("e,ceh->h", b_enc.reshape(-1), w_proj3)[None, :]

    # Lane-dense predictor output: zero-pad P up to a multiple of 128.
    # (v5e caveat from the review: wider output stores could be re-measured
    #  there, but they remove masked vst.msk stores everywhere.)
    P_pad = max(128, _round_up(P, 128))
    w_pred_pad = jnp.zeros((H, P_pad), jnp.float32).at[:, :P].set(w_pred)
    b_pred_pad = jnp.zeros((1, P_pad), jnp.float32).at[:, :P].set(b_pred)

    # Fold w_pred into the first matmul only while the extra columns ride along
    # for free on the MXU (tiny hidden width); otherwise merge the two w_pred
    # dots inside the kernel instead.
    fold = (H + P) <= 128

    # Batch tiling: pad to a multiple of 8 (MXU sublanes), tile up to 512 rows,
    # and split a single-tile batch in two so both v7x TensorCores get work.
    tb = min(512, _round_up(B, 8))
    if B > 16 and _round_up(B, tb) // tb < 2:
        tb = _round_up((B + 1) // 2, 8)
    B_pad = _round_up(B, tb)
    nb = B_pad // tb

    x_flat = x.reshape(B, CT).astype(jnp.float32)
    if B_pad != B:
        x_flat = jnp.pad(x_flat, ((0, B_pad - B), (0, 0)))
    x_flat = x_flat.astype(jnp.bfloat16)

    in_specs = [pl.BlockSpec((tb, CT), lambda i: (i, 0))]
    args = [x_flat]

    if fold:
        w_big = jnp.concatenate([w_comb @ w_pred_pad, w_comb], axis=1).astype(jnp.bfloat16)
        b_big = jnp.concatenate([b_comb @ w_pred_pad + b_pred_pad, b_comb], axis=1)
        args += [w_big, b_big]
        in_specs += [pl.BlockSpec((CT, P_pad + H), lambda i: (0, 0)),
                     pl.BlockSpec((1, P_pad + H), lambda i: (0, 0))]
        if have_noise:
            args.append(w_pred_pad.astype(jnp.bfloat16))
            in_specs.append(pl.BlockSpec((H, P_pad), lambda i: (0, 0)))
    else:
        args += [w_comb.astype(jnp.bfloat16), b_comb,
                 w_pred_pad.astype(jnp.bfloat16), b_pred_pad]
        in_specs += [pl.BlockSpec((CT, H), lambda i: (0, 0)),
                     pl.BlockSpec((1, H), lambda i: (0, 0)),
                     pl.BlockSpec((H, P_pad), lambda i: (0, 0)),
                     pl.BlockSpec((1, P_pad), lambda i: (0, 0))]

    if have_noise:
        noise_f = noise.astype(jnp.float32)
        if B_pad != B:
            noise_f = jnp.pad(noise_f, ((0, 0), (0, B_pad - B), (0, 0)))
        args.append(noise_f.astype(jnp.bfloat16))
        # noise stays (K, B_pad, H); per-tile layout handled by the index_map
        in_specs.append(pl.BlockSpec((K, tb, H), lambda i: (0, i, 0)))

    out_shapes = (jax.ShapeDtypeStruct((K + 1, nb, tb, P_pad), jnp.float32),
                  jax.ShapeDtypeStruct((nb, 8, 128), jnp.float32))
    out_specs = [pl.BlockSpec((K + 1, 1, tb, P_pad), lambda i: (0, i, 0, 0)),
                 pl.BlockSpec((1, 8, 128), lambda i: (i, 0, 0))]

    if fold:
        flops = 2 * B_pad * CT * (P_pad + H) + (2 * K * B_pad * H * P_pad if have_noise else 0)
    else:
        flops = 2 * B_pad * CT * H + 2 * (K + 1) * B_pad * H * P_pad
    in_bytes = sum(int(np.prod(a.shape)) * a.dtype.itemsize for a in args)
    out_bytes = 4 * ((K + 1) * B_pad * P_pad + nb * 8 * 128)

    slab, loss_part = pl.pallas_call(
        _make_kernel(fold=fold, have_noise=have_noise, batch_actual=B,
                     tb=tb, K=K, H=H, P_pad=P_pad),
        grid=(nb,),
        in_specs=in_specs,
        out_specs=out_specs,
        out_shape=out_shapes,
        compiler_params=pltpu.CompilerParams(
            dimension_semantics=("parallel",),
            vmem_limit_bytes=48 * 1024 * 1024),
        cost_estimate=pl.CostEstimate(flops=int(flops), transcendentals=0,
                                      bytes_accessed=int(in_bytes + out_bytes)),
    )(*args)

    preds = (slab[0, :, :, :P].reshape(B_pad, P)[:B]
             .reshape(B, output_len, target_dim))
    loss_reg = jnp.sum(loss_part[:, 0, 0]) / B      # only used if regularizer == 'l1'
    if have_noise:
        preds_noi = (slab[1:, :, :, :P].reshape(K, B_pad, P)[:, :B]
                     .reshape(K, B, output_len, target_dim))
        return preds, preds_noi, loss_reg
    return preds, None, loss_reg


def init_params(key, time_window, input_dim, enc_dim, out_dim, output_len, target_dim):
    P = output_len * target_dim
    ks = jax.random.split(key, 6)
    return {
        "w_enc":  jax.random.normal(ks[0], (time_window, enc_dim), jnp.float32) * 0.1,
        "b_enc":  jax.random.normal(ks[1], (1, enc_dim), jnp.float32) * 0.1,
        "w_proj": jax.random.normal(ks[2], (input_dim * enc_dim, out_dim), jnp.float32) * 0.1,
        "b_proj": jax.random.normal(ks[3], (1, out_dim), jnp.float32) * 0.1,
        "w_pred": jax.random.normal(ks[4], (out_dim, P), jnp.float32) * 0.1,
        "b_pred": jax.random.normal(ks[5], (1, P), jnp.float32) * 0.1,
    }


def _run_case(seed, *, B, C, T, E, H, output_len, target_dim, K, noise_sig):
    key = jax.random.PRNGKey(seed)
    kx, kn, kp = jax.random.split(key, 3)
    x = jax.random.normal(kx, (B, C, T), jnp.float32)
    params = init_params(kp, T, C, E, H, output_len, target_dim)

    # noise ~ np.random.choice([-1, 1], (K, B, out_dim)) * noise_sig[0], drawn
    # deterministically with a JAX key (the torch module uses host numpy RNG).
    noise = (jax.random.rademacher(kn, (K, B, H), dtype=jnp.int32).astype(jnp.float32)
             * noise_sig)

    preds, preds_noi, loss = noise_amp_forward(x, params, output_len, target_dim,
                                               noise=noise)
    preds_nn, none_out, loss_nn = noise_amp_forward(x, params, output_len, target_dim,
                                                    noise=None)
    jax.block_until_ready((preds, preds_noi, loss, preds_nn, loss_nn))
    assert none_out is None

    # pure-JAX f32 reference (unfused, matches the PyTorch module exactly)
    state = jnp.einsum("bct,te->bce", x, params["w_enc"]) + params["b_enc"]
    hidden = state.reshape(B, C * E) @ params["w_proj"] + params["b_proj"]
    preds_r = (hidden @ params["w_pred"] + params["b_pred"]
               ).reshape(B, output_len, target_dim)
    preds_noi_r = ((hidden[None] + noise) @ params["w_pred"] + params["b_pred"]
                   ).reshape(K, B, output_len, target_dim)
    loss_r = jnp.sum(jnp.mean(jnp.abs(hidden), axis=0))

    # bf16 inputs with f32 accumulation -> loosened tolerances vs the f32 ref
    np.testing.assert_allclose(np.asarray(preds), np.asarray(preds_r),
                               rtol=3e-2, atol=3e-2)
    np.testing.assert_allclose(np.asarray(preds_noi), np.asarray(preds_noi_r),
                               rtol=3e-2, atol=3e-2)
    np.testing.assert_allclose(np.asarray(preds_nn), np.asarray(preds_r),
                               rtol=3e-2, atol=3e-2)
    np.testing.assert_allclose(np.asarray(loss), np.asarray(loss_r),
                               rtol=6e-2, atol=1e-2)
    np.testing.assert_allclose(np.asarray(loss_nn), np.asarray(loss_r),
                               rtol=6e-2, atol=1e-2)


if __name__ == "__main__":
    # fold path (H + P <= 128): single wide matmul per batch tile
    _run_case(0, B=2, C=4, T=8, E=16, H=32, output_len=6, target_dim=1,
              K=3, noise_sig=0.05)
    # non-fold path (H + P > 128): merged (hidden ; noise) @ w_pred matmul
    _run_case(1, B=4, C=2, T=8, E=8, H=128, output_len=6, target_dim=1,
              K=2, noise_sig=0.05)
    print("KERNEL_OK")
</pallas_src>

<mosaic_0001>
module attributes {stable_mosaic.version = 11 : i64} {
  func.func @kernel(%arg0: i32, %arg1: memref<8x32xbf16, #tpu.memory_space<vmem>>, %arg2: memref<32x160xbf16, #tpu.memory_space<vmem>>, %arg3: memref<1x160xf32, #tpu.memory_space<vmem>>, %arg4: memref<32x128xbf16, #tpu.memory_space<vmem>>, %arg5: memref<3x8x32xbf16, #tpu.memory_space<vmem>>, %arg6: memref<4x1x8x128xf32, #tpu.memory_space<vmem>>, %arg7: memref<1x8x128xf32, #tpu.memory_space<vmem>>) attributes {dimension_semantics = [#tpu.dimension_semantics<parallel>], iteration_bounds = array<i64: 1>, scalar_prefetch = 0 : i64, scratch_operands = 0 : i64, tpu.core_type = #tpu.core_type<tc>, window_params = [{transform_indices = @transform_0, window_bounds = array<i64: 8, 32>}, {pipeline_mode = #tpu.pipeline_mode<synchronous>, transform_indices = @transform_1, window_bounds = array<i64: 32, 160>}, {pipeline_mode = #tpu.pipeline_mode<synchronous>, transform_indices = @transform_2, window_bounds = array<i64: 1, 160>}, {pipeline_mode = #tpu.pipeline_mode<synchronous>, transform_indices = @transform_3, window_bounds = array<i64: 32, 128>}, {transform_indices = @transform_4, window_bounds = array<i64: 3, 8, 32>}, {transform_indices = @transform_5, window_bounds = array<i64: 4, 1, 8, 128>}, {transform_indices = @transform_6, window_bounds = array<i64: 1, 8, 128>}]} {
    %c0 = arith.constant 0 : index
    %c0_0 = arith.constant 0 : index
    %0 = vector.load %arg1[%c0, %c0_0] : memref<8x32xbf16, #tpu.memory_space<vmem>>, vector<8x32xbf16>
    %c0_1 = arith.constant 0 : index
    %c0_2 = arith.constant 0 : index
    %1 = vector.load %arg2[%c0_1, %c0_2] : memref<32x160xbf16, #tpu.memory_space<vmem>>, vector<32x160xbf16>
    %cst = arith.constant dense<0.000000e+00> : vector<8x160xf32>
    %2 = tpu.matmul %0, %1, %cst {dimension_numbers = #tpu.dot_dimension_numbers<[1], [0], [0], [1], [0, 0, 1, 1], [], []>} : vector<8x32xbf16>, vector<32x160xbf16>, vector<8x160xf32> -> vector<8x160xf32>
    %c0_3 = arith.constant 0 : index
    %c0_4 = arith.constant 0 : index
    %3 = vector.load %arg3[%c0_3, %c0_4] : memref<1x160xf32, #tpu.memory_space<vmem>>, vector<1x160xf32>
    %4 = vector.broadcast %3 : vector<1x160xf32> to vector<8x160xf32>
    %5 = arith.addf %2, %4 : vector<8x160xf32>
    %6 = vector.extract_strided_slice %5 {offsets = [0, 0], sizes = [8, 128], strides = [1, 1]} : vector<8x160xf32> to vector<8x128xf32>
    %7 = vector.extract_strided_slice %5 {offsets = [0, 128], sizes = [8, 32], strides = [1, 1]} : vector<8x160xf32> to vector<8x32xf32>
    %c0_5 = arith.constant 0 : index
    %c0_6 = arith.constant 0 : index
    %c0_7 = arith.constant 0 : index
    %8 = vector.load %arg5[%c0_5, %c0_6, %c0_7] : memref<3x8x32xbf16, #tpu.memory_space<vmem>>, vector<3x8x32xbf16>
    %9 = vector.shape_cast %8 : vector<3x8x32xbf16> to vector<24x32xbf16>
    %c0_8 = arith.constant 0 : index
    %c0_9 = arith.constant 0 : index
    %10 = vector.load %arg4[%c0_8, %c0_9] : memref<32x128xbf16, #tpu.memory_space<vmem>>, vector<32x128xbf16>
    %cst_10 = arith.constant dense<0.000000e+00> : vector<24x128xf32>
    %11 = tpu.matmul %9, %10, %cst_10 {dimension_numbers = #tpu.dot_dimension_numbers<[1], [0], [0], [1], [0, 0, 1, 1], [], []>} : vector<24x32xbf16>, vector<32x128xbf16>, vector<24x128xf32> -> vector<24x128xf32>
    %12 = tpu.iota {dimensions = array<i32: 0>} : vector<8x1xi32>
    %c8_i32 = arith.constant 8 : i32
    %13 = arith.muli %arg0, %c8_i32 : i32
    %14 = vector.broadcast %13 : i32 to vector<8x1xi32>
    %15 = arith.addi %12, %14 : vector<8x1xi32>
    %c2_i32 = arith.constant 2 : i32
    %16 = vector.broadcast %c2_i32 : i32 to vector<8x1xi32>
    %17 = arith.cmpi slt, %15, %16 : vector<8x1xi32>
    %18 = arith.extui %17 : vector<8x1xi1> to vector<8x1xi32>
    %19 = arith.sitofp %18 : vector<8x1xi32> to vector<8x1xf32>
    %20 = math.absf %7 : vector<8x32xf32>
    %21 = vector.broadcast %19 : vector<8x1xf32> to vector<8x32xf32>
    %22 = arith.mulf %20, %21 : vector<8x32xf32>
    %23 = vector.shape_cast %22 : vector<8x32xf32> to vector<1x8x32xf32>
    %cst_11 = arith.constant dense<0.000000e+00> : vector<1xf32>
    %24 = vector.multi_reduction <add>, %23, %cst_11 [1, 2] : vector<1x8x32xf32> to vector<1xf32>
    %25 = vector.shape_cast %24 : vector<1xf32> to vector<1x1x1xf32>
    %26 = vector.extract %25[0, 0, 0] : f32 from vector<1x1x1xf32>
    %27 = vector.broadcast %26 : f32 to vector<1x8x128xf32>
    %c0_12 = arith.constant 0 : index
    %c0_13 = arith.constant 0 : index
    %c0_14 = arith.constant 0 : index
    %28 = vector.load %arg7[%c0_12, %c0_13, %c0_14] : memref<1x8x128xf32, #tpu.memory_space<vmem>>, vector<1x8x128xf32>
    tpu.vector_store %arg7[%c0_12, %c0_13, %c0_14], %27 {strides = array<i32>} : memref<1x8x128xf32, #tpu.memory_space<vmem>>, vector<1x8x128xf32>,
    %c0_15 = arith.constant 0 : index
    %c0_16 = arith.constant 0 : index
    %c0_17 = arith.constant 0 : index
    %c0_18 = arith.constant 0 : index
    %29 = vector.load %arg6[%c0_15, %c0_16, %c0_17, %c0_18] : memref<4x1x8x128xf32, #tpu.memory_space<vmem>>, vector<1x1x8x128xf32>
    %30 = vector.shape_cast %29 : vector<1x1x8x128xf32> to vector<8x128xf32>
    %31 = vector.shape_cast %6 : vector<8x128xf32> to vector<1x1x8x128xf32>
    tpu.vector_store %arg6[%c0_15, %c0_16, %c0_17, %c0_18], %31 {strides = array<i32>} : memref<4x1x8x128xf32, #tpu.memory_space<vmem>>, vector<1x1x8x128xf32>,
    %32 = vector.extract_strided_slice %11 {offsets = [0, 0], sizes = [8, 128], strides = [1, 1]} : vector<24x128xf32> to vector<8x128xf32>
    %33 = arith.addf %6, %32 : vector<8x128xf32>
    %c1 = arith.constant 1 : index
    %c0_19 = arith.constant 0 : index
    %c0_20 = arith.constant 0 : index
    %c0_21 = arith.constant 0 : index
    %34 = vector.load %arg6[%c1, %c0_19, %c0_20, %c0_21] : memref<4x1x8x128xf32, #tpu.memory_space<vmem>>, vector<1x1x8x128xf32>
    %35 = vector.shape_cast %34 : vector<1x1x8x128xf32> to vector<8x128xf32>
    %36 = vector.shape_cast %33 : vector<8x128xf32> to vector<1x1x8x128xf32>
    tpu.vector_store %arg6[%c1, %c0_19, %c0_20, %c0_21], %36 {strides = array<i32>} : memref<4x1x8x128xf32, #tpu.memory_space<vmem>>, vector<1x1x8x128xf32>,
    %37 = vector.extract_strided_slice %11 {offsets = [8, 0], sizes = [8, 128], strides = [1, 1]} : vector<24x128xf32> to vector<8x128xf32>
    %38 = arith.addf %6, %37 : vector<8x128xf32>
    %c2 = arith.constant 2 : index
    %c0_22 = arith.constant 0 : index
    %c0_23 = arith.constant 0 : index
    %c0_24 = arith.constant 0 : index
    %39 = vector.load %arg6[%c2, %c0_22, %c0_23, %c0_24] : memref<4x1x8x128xf32, #tpu.memory_space<vmem>>, vector<1x1x8x128xf32>
    %40 = vector.shape_cast %39 : vector<1x1x8x128xf32> to vector<8x128xf32>
    %41 = vector.shape_cast %38 : vector<8x128xf32> to vector<1x1x8x128xf32>
    tpu.vector_store %arg6[%c2, %c0_22, %c0_23, %c0_24], %41 {strides = array<i32>} : memref<4x1x8x128xf32, #tpu.memory_space<vmem>>, vector<1x1x8x128xf32>,
    %42 = vector.extract_strided_slice %11 {offsets = [16, 0], sizes = [8, 128], strides = [1, 1]} : vector<24x128xf32> to vector<8x128xf32>
    %43 = arith.addf %6, %42 : vector<8x128xf32>
    %c3 = arith.constant 3 : index
    %c0_25 = arith.constant 0 : index
    %c0_26 = arith.constant 0 : index
    %c0_27 = arith.constant 0 : index
    %44 = vector.load %arg6[%c3, %c0_25, %c0_26, %c0_27] : memref<4x1x8x128xf32, #tpu.memory_space<vmem>>, vector<1x1x8x128xf32>
    %45 = vector.shape_cast %44 : vector<1x1x8x128xf32> to vector<8x128xf32>
    %46 = vector.shape_cast %43 : vector<8x128xf32> to vector<1x1x8x128xf32>
    tpu.vector_store %arg6[%c3, %c0_25, %c0_26, %c0_27], %46 {strides = array<i32>} : memref<4x1x8x128xf32, #tpu.memory_space<vmem>>, vector<1x1x8x128xf32>,
    return
  }
  func.func @transform_0(%arg0: i32) -> (i32, i32) {
    %c0_i32 = arith.constant 0 : i32
    %c0_i32_0 = arith.constant 0 : i32
    return %arg0, %c0_i32 : i32, i32
  }
  func.func @transform_1(%arg0: i32) -> (i32, i32) {
    %c0_i32 = arith.constant 0 : i32
    %c0_i32_0 = arith.constant 0 : i32
    %c0_i32_1 = arith.constant 0 : i32
    return %c0_i32, %c0_i32_0 : i32, i32
  }
  func.func @transform_2(%arg0: i32) -> (i32, i32) {
    %c0_i32 = arith.constant 0 : i32
    %c0_i32_0 = arith.constant 0 : i32
    %c0_i32_1 = arith.constant 0 : i32
    return %c0_i32, %c0_i32_0 : i32, i32
  }
  func.func @transform_3(%arg0: i32) -> (i32, i32) {
    %c0_i32 = arith.constant 0 : i32
    %c0_i32_0 = arith.constant 0 : i32
    %c0_i32_1 = arith.constant 0 : i32
    return %c0_i32, %c0_i32_0 : i32, i32
  }
  func.func @transform_4(%arg0: i32) -> (i32, i32, i32) {
    %c0_i32 = arith.constant 0 : i32
    %c0_i32_0 = arith.constant 0 : i32
    %c0_i32_1 = arith.constant 0 : i32
    return %c0_i32, %arg0, %c0_i32_0 : i32, i32, i32
  }
  func.func @transform_5(%arg0: i32) -> (i32, i32, i32, i32) {
    %c0_i32 = arith.constant 0 : i32
    %c0_i32_0 = arith.constant 0 : i32
    %c0_i32_1 = arith.constant 0 : i32
    %c0_i32_2 = arith.constant 0 : i32
    return %c0_i32, %arg0, %c0_i32_0, %c0_i32_1 : i32, i32, i32, i32
  }
  func.func @transform_6(%arg0: i32) -> (i32, i32, i32) {
    %c0_i32 = arith.constant 0 : i32
    %c0_i32_0 = arith.constant 0 : i32
    %c0_i32_1 = arith.constant 0 : i32
    return %arg0, %c0_i32, %c0_i32_0 : i32, i32, i32
  }
}

</mosaic_0001>

<llo_original>
// kernel: tpu_custom_call.1
$region0: #{tpu_custom_call.1}
  #allocation0 [shape = 'u32[]', space=smem, size = 0x4, offset = 0x4, fixed_abs, tag = 'smem constant byte address 0x4 - core index']
  #allocation1 [shape = 'u32[72,128]{1,0:T(1,128)}', space=vmem, size = 0x9000, scoped, tag = 'internal scratch']
  %s0 = inlined_call_operand.hbm [shape: bf16[8,32], index: 0, kind: input, shape index: {}]
  %s1 = inlined_call_operand.hbm [shape: bf16[32,160], index: 1, kind: input, shape index: {}]
  %s2 = inlined_call_operand.hbm [shape: f32[1,160], index: 2, kind: input, shape index: {}]
  %s3 = inlined_call_operand.hbm [shape: bf16[32,128], index: 3, kind: input, shape index: {}]
  %s4 = inlined_call_operand.hbm [shape: bf16[3,8,32], index: 4, kind: input, shape index: {}]
  %s5 = inlined_call_operand.hbm [shape: f32[4,1,8,128], index: 5, kind: output, shape index: {0}]
  %s6 = inlined_call_operand.hbm [shape: f32[1,8,128], index: 6, kind: output, shape index: {1}]
  %7 = xla_tuple %s5, %s6
  %s8 = sld [smem:[#allocation0]]
  $region58: #{tpu_custom_call.1} parent=0
    _
  %s10 = ssub.s32 1, %s8
  %s11 = scalar_select 0, %s10, %s8
  $region1: #{tpu_custom_call.1} parent=0
    #allocation2 [shape = 'u8[2048]{0}', space=vmem, size = 0x800, scoped, tag = 'input window, operand 0, single buffered']
    #allocation3 [shape = 's32[1]{0}', space=sflag, size = 0x4, scoped, tag = 'scoped memory for tpu_custom_call.1']
    #allocation4 [shape = 's32[1]{0}', space=sflag, size = 0x4, scoped, tag = 'scoped memory for tpu_custom_call.1']
    #allocation5 [shape = 'u8[16384]{0}', space=vmem, size = 0x4000, scoped, tag = 'input window, operand 1, single buffered']
    #allocation6 [shape = 's32[1]{0}', space=sflag, size = 0x4, scoped, tag = 'scoped memory for tpu_custom_call.1']
    #allocation7 [shape = 'u8[1024]{0}', space=vmem, size = 0x400, scoped, tag = 'input window, operand 2, single buffered']
    #allocation8 [shape = 'u8[8192]{0}', space=vmem, size = 0x2000, scoped, tag = 'input window, operand 3, single buffered']
    #allocation9 [shape = 's32[1]{0}', space=sflag, size = 0x4, scoped, tag = 'scoped memory for tpu_custom_call.1']
    #allocation10 [shape = 'u8[6144]{0}', space=vmem, size = 0x1800, scoped, tag = 'input window, operand 4, single buffered']
    #allocation11 [shape = 'u8[16384]{0}', space=vmem, size = 0x4000, scoped, tag = 'output window, operand 0, single buffered']
    #allocation12 [shape = 'u8[4096]{0}', space=vmem, size = 0x1000, scoped, tag = 'output window, operand 1, single buffered']
    #allocation13 [shape = 's32[1]{0}', space=sflag, size = 0x4, scoped, tag = 'scoped memory for tpu_custom_call.1']
    %12 = vsyncpa [#allocation3], 0
    %13 = vsyncpa [#allocation6], 0
    %14 = vsyncpa [#allocation9], 0
    %15 = vsyncpa [#allocation4], 0
    %16 = vsyncpa [#allocation13], 0
    // Predicated region
    $region2: #{tpu_custom_call.1} parent=1 // pred_check
      _
    $region3: #{tpu_custom_call.1} parent=1 // pred_check_branch
      %18 = sbr.rel (0) target = $region5
    $region4: #{tpu_custom_call.1} parent=1 // pred_region
      %20 = vsyncadd [#allocation3], 0
      %s22 = sshll.u32 %s0, 4
      %s23 = int_to_ptr.hbm [resolvable:$true] %s22
      %s24 = sshll.u32 [#allocation2], 4
      %s25 = int_to_ptr.vmem [resolvable:$true] %s24
      %27 = dma.hbm_to_vmem [thread:$0]  %s23, 64, %s25, [#allocation3]
    $region5: #{tpu_custom_call.1} parent=1 // pred_fallthru
      _
    // Predicated region
    $region6: #{tpu_custom_call.1} parent=1 // pred_check
      _
    $region7: #{tpu_custom_call.1} parent=1 // pred_check_branch
      %29 = sbr.rel (0) target = $region9
    $region8: #{tpu_custom_call.1} parent=1 // pred_region
      %31 = vsyncadd [#allocation6], 0
      %s32 = sshll.u32 %s1, 4
      %s33 = int_to_ptr.hbm [resolvable:$true] %s32
      %s34 = sshll.u32 [#allocation5], 4
      %s35 = int_to_ptr.vmem [resolvable:$true] %s34
      %40 = dma.hbm_to_vmem [thread:$0]  %s33, 512, %s35, [#allocation6], 128, 128, 8
    $region9: #{tpu_custom_call.1} parent=1 // pred_fallthru
      _
    // Predicated region
    $region10: #{tpu_custom_call.1} parent=1 // pred_check
      _
    $region11: #{tpu_custom_call.1} parent=1 // pred_check_branch
      %42 = sbr.rel (0) target = $region13
    $region12: #{tpu_custom_call.1} parent=1 // pred_region
      %44 = vsyncadd [#allocation6], 0
      %s46 = sshll.u32 %s2, 4
      %s47 = int_to_ptr.hbm [resolvable:$true] %s46
      %s48 = sshll.u32 [#allocation7], 4
      %s49 = int_to_ptr.vmem [resolvable:$true] %s48
      %51 = dma.hbm_to_vmem [thread:$0]  %s47, 32, %s49, [#allocation6]
    $region13: #{tpu_custom_call.1} parent=1 // pred_fallthru
      _
    // Predicated region
    $region14: #{tpu_custom_call.1} parent=1 // pred_check
      _
    $region15: #{tpu_custom_call.1} parent=1 // pred_check_branch
      %53 = sbr.rel (0) target = $region17
    $region16: #{tpu_custom_call.1} parent=1 // pred_region
      %55 = vsyncadd [#allocation9], 0
      %s56 = sshll.u32 %s3, 4
      %s57 = int_to_ptr.hbm [resolvable:$true] %s56
      %s58 = sshll.u32 [#allocation8], 4
      %s59 = int_to_ptr.vmem [resolvable:$true] %s58
      %64 = dma.hbm_to_vmem [thread:$0]  %s57, 256, %s59, [#allocation9], 64, 64, 4
    $region17: #{tpu_custom_call.1} parent=1 // pred_fallthru
      _
    // Predicated region
    $region18: #{tpu_custom_call.1} parent=1 // pred_check
      _
    $region19: #{tpu_custom_call.1} parent=1 // pred_check_branch
      %66 = sbr.rel (0) target = $region21
    $region20: #{tpu_custom_call.1} parent=1 // pred_region
      %68 = vsyncadd [#allocation9], 0
      %s69 = sshll.u32 %s4, 4
      %s70 = int_to_ptr.hbm [resolvable:$true] %s69
      %s71 = sshll.u32 [#allocation10], 4
      %s72 = int_to_ptr.vmem [resolvable:$true] %s71
      %77 = dma.hbm_to_vmem [thread:$0]  %s70, 192, %s72, [#allocation9], 64, 64, 4
    $region21: #{tpu_custom_call.1} parent=1 // pred_fallthru
      _
    // Predicated region
    $region22: #{tpu_custom_call.1} parent=1 // pred_check
      _
    $region23: #{tpu_custom_call.1} parent=1 // pred_check_branch
      %79 = sbr.rel (0) target = $region25
    $region24: #{tpu_custom_call.1} parent=1 // pred_region
      %81 = dma.done [#allocation3], 64
    $region25: #{tpu_custom_call.1} parent=1 // pred_fallthru
      _
    // Predicated region
    $region26: #{tpu_custom_call.1} parent=1 // pred_check
      _
    $region27: #{tpu_custom_call.1} parent=1 // pred_check_branch
      %83 = sbr.rel (0) target = $region29
    $region28: #{tpu_custom_call.1} parent=1 // pred_region
      %85 = dma.done [#allocation6], 512
    $region29: #{tpu_custom_call.1} parent=1 // pred_fallthru
      _
    // Predicated region
    $region30: #{tpu_custom_call.1} parent=1 // pred_check
      _
    $region31: #{tpu_custom_call.1} parent=1 // pred_check_branch
      %87 = sbr.rel (0) target = $region33
    $region32: #{tpu_custom_call.1} parent=1 // pred_region
      %89 = dma.done [#allocation6], 32
    $region33: #{tpu_custom_call.1} parent=1 // pred_fallthru
      _
    // Predicated region
    $region34: #{tpu_custom_call.1} parent=1 // pred_check
      _
    $region35: #{tpu_custom_call.1} parent=1 // pred_check_branch
      %91 = sbr.rel (0) target = $region37
    $region36: #{tpu_custom_call.1} parent=1 // pred_region
      %93 = dma.done [#allocation9], 256
    $region37: #{tpu_custom_call.1} parent=1 // pred_fallthru
      _
    // Predicated region
    $region38: #{tpu_custom_call.1} parent=1 // pred_check
      _
    $region39: #{tpu_custom_call.1} parent=1 // pred_check_branch
      %95 = sbr.rel (0) target = $region41
    $region40: #{tpu_custom_call.1} parent=1 // pred_region
      %97 = dma.done [#allocation9], 192
    $region41: #{tpu_custom_call.1} parent=1 // pred_fallthru
      _
    %v99 = vld [vmem:[#allocation2] sm:$0xf]
    %v100 = vld [vmem:[#allocation5] sm:$0xff]
    %v101 = vld [vmem:[#allocation5 + $0x8] sm:$0xff]
    %v102 = vld [vmem:[#allocation5 + $0x10] sm:$0xff]
    %v103 = vld [vmem:[#allocation5 + $0x18] sm:$0xff]
    %v104 = vld [vmem:[#allocation7] sm:$0x3]
    %v106 = vperm.slane %v104, 0
    %v107 = vperm.slane %v104, 1
    %v114 = vunpack.c.l.b16 %v100
    %v115 = vunpack.c.h.b16 %v100
    %v116 = vunpack.c.l.b16 %v101
    %v117 = vunpack.c.h.b16 %v101
    %v118 = vunpack.c.l.b16 %v102
    %v119 = vunpack.c.h.b16 %v102
    %v120 = vunpack.c.l.b16 %v103
    %v121 = vunpack.c.h.b16 %v103
    %v122 = vpack.c.b16 %v116, %v114
    %v123 = vpack.c.b16 %v117, %v115
    %v124 = vpack.c.b16 %v120, %v118
    %v125 = vpack.c.b16 %v121, %v119
    %vm130 = vcmask 261120
    %v132 = vsel %vm130, %v99, 0
    %134 = vmatpush.bf16.msra.mxu0 0
    %135 = vmatpush.bf16.msra.mxu0 0
    %136 = vmatpush.bf16.msra.mxu0 0
    %137 = vmatpush.bf16.msra.mxu0 0
    %138 = vmatpush.bf16.msra.mxu0 0
    %139 = vmatpush.bf16.msra.mxu0 0
    %140 = vmatpush.bf16.msra.mxu0 %v124
    %141 = vmatpush.bf16.msra.mxu0 %v122
    %142 = vmatmul.bf16.gmra.mxu0 %v132
    %v143 = vpop.f32.mrf.mxu0
    %v144 = vadd.f32 %v106, %v143
    %v145 = vpop.f32.mrf.mxu0
    %146 = vdwg.mxu0
    %147 = vmatpush.bf16.msra.mxu0 0
    %148 = vmatpush.bf16.msra.mxu0 0
    %149 = vmatpush.bf16.msra.mxu0 0
    %150 = vmatpush.bf16.msra.mxu0 0
    %151 = vmatpush.bf16.msra.mxu0 0
    %152 = vmatpush.bf16.msra.mxu0 0
    %153 = vmatpush.bf16.msra.mxu0 %v125
    %154 = vmatpush.bf16.msra.mxu0 %v123
    %155 = vmatmul.bf16.gmra.mxu0 %v132
    %v156 = vpop.f32.mrf.mxu0
    %v157 = vadd.f32 %v107, %v156
    %v158 = vpop.f32.mrf.mxu0
    %159 = vdwg.mxu0
    %v160 = vld [vmem:[#allocation10] sm:$0xf]
    %v161 = vld [vmem:[#allocation10 + $0x4] sm:$0xf]
    %v162 = vld [vmem:[#allocation10 + $0x8] sm:$0xf]
    %v163 = vld [vmem:[#allocation8] sm:$0xf]
    %v164 = vld [vmem:[#allocation8 + $0x4] sm:$0xf]
    %v165 = vld [vmem:[#allocation8 + $0x8] sm:$0xf]
    %v166 = vld [vmem:[#allocation8 + $0xc] sm:$0xf]
    %v170 = vunpack.c.l.b16 %v160
    %v171 = vunpack.c.l.b16 %v161
    %v172 = vunpack.c.l.b16 %v162
    %v173 = vpack.c.b16 %v171, %v170
    %v174 = vpack.c.b16 %v172, %v172
    %v179 = vunpack.c.l.b16 %v163
    %v180 = vunpack.c.l.b16 %v164
    %v181 = vunpack.c.l.b16 %v165
    %v182 = vunpack.c.l.b16 %v166
    %v183 = vpack.c.b16 %v180, %v179
    %v184 = vpack.c.b16 %v182, %v181
    %v188 = vsel %vm130, %v173, 0
    %v191 = vsel %vm130, %v174, 0
    %193 = vmatpush.bf16.msra.mxu0 0
    %194 = vmatpush.bf16.msra.mxu0 0
    %195 = vmatpush.bf16.msra.mxu0 0
    %196 = vmatpush.bf16.msra.mxu0 0
    %197 = vmatpush.bf16.msra.mxu0 0
    %198 = vmatpush.bf16.msra.mxu0 0
    %199 = vmatpush.bf16.msra.mxu0 %v184
    %200 = vmatpush.bf16.msra.mxu0 %v183
    %201 = vmatmul.bf16.gmra.mxu0 %v188
    %v202 = vpop.f32.mrf.mxu0
    %v203 = vadd.f32 0.0, %v202
    %v204 = vpop.f32.mrf.mxu0
    %v205 = vadd.f32 0.0, %v204
    %206 = vmatmul.bf16.gmra.mxu0 %v191
    %v207 = vpop.f32.mrf.mxu0
    %v208 = vadd.f32 0.0, %v207
    %v209 = vpop.f32.mrf.mxu0
    %210 = vdwg.mxu0
    %v211 = vlaneseq
    %v212 = vshrl.u32 %v211, 7
    %s213 = smul.u32 0, 8
    %v214 = vstv %s213
    %v215 = vadd.s32 %v212, %v214
    %vm216 = vcmp.lt.s32.totalorder %v215, 2
    %v217 = vsel %vm216, 1, 0
    %v218 = vcvt.s32.f32 %v217
    %v219 = vand.u32 2147483647, %v157
    %v220 = vmul.f32 %v219, %v218
    %v221 = vsel %vm130, %v220, 0.0
    %222 = vadd.xlane.f32.xlu0 %v221
    %v223 = vpop.xlane.xlu0 %222
    %v224 = vrot.slane %v223, 4
    %v225 = vadd.f32 %v223, %v224
    %v226 = vrot.slane %v225, 2
    %v227 = vadd.f32 %v225, %v226
    %v228 = vrot.slane %v227, 1
    %v229 = vadd.f32 %v227, %v228
    %s230 = vtos %v229
    %v231 = vstv %s230
    %232 = vst [vmem:[#allocation12] sm:$0xff] %v231
    %233 = vst [vmem:[#allocation11] sm:$0xff] %v144
    %v234 = vadd.f32 %v144, %v203
    %s235 = scalar_lea.vmem [#allocation11], 8
    %236 = vst [vmem:[%s235] sm:$0xff] %v234
    %v237 = vadd.f32 %v144, %v205
    %s238 = scalar_lea.vmem [#allocation11], 16
    %239 = vst [vmem:[%s238] sm:$0xff] %v237
    %v240 = vadd.f32 %v144, %v208
    %s241 = scalar_lea.vmem [#allocation11], 24
    %242 = vst [vmem:[%s241] sm:$0xff] %v240
    // Predicated region
    $region42: #{tpu_custom_call.1} parent=1 // pred_check
      _
    $region43: #{tpu_custom_call.1} parent=1 // pred_check_branch
      %244 = sbr.rel (0) target = $region45
    $region44: #{tpu_custom_call.1} parent=1 // pred_region
      %246 = vsyncadd [#allocation4], 0
      %s247 = sshll.u32 [#allocation11], 4
      %s248 = int_to_ptr.vmem [resolvable:$true] %s247
      %s249 = sshll.u32 %s5, 4
      %s250 = int_to_ptr.hbm [resolvable:$true] %s249
      %255 = dma.vmem_to_hbm [thread:$0]  %s248, 512, %s250, [#allocation4], 128, 128, 8
    $region45: #{tpu_custom_call.1} parent=1 // pred_fallthru
      _
    // Predicated region
    $region46: #{tpu_custom_call.1} parent=1 // pred_check
      _
    $region47: #{tpu_custom_call.1} parent=1 // pred_check_branch
      %257 = sbr.rel (0) target = $region49
    $region48: #{tpu_custom_call.1} parent=1 // pred_region
      %259 = vsyncadd [#allocation13], 0
      %s261 = sshll.u32 [#allocation12], 4
      %s262 = int_to_ptr.vmem [resolvable:$true] %s261
      %s263 = sshll.u32 %s6, 4
      %s264 = int_to_ptr.hbm [resolvable:$true] %s263
      %266 = dma.vmem_to_hbm [thread:$0]  %s262, 128, %s264, [#allocation13]
    $region49: #{tpu_custom_call.1} parent=1 // pred_fallthru
      _
    // Predicated region
    $region50: #{tpu_custom_call.1} parent=1 // pred_check
      _
    $region51: #{tpu_custom_call.1} parent=1 // pred_check_branch
      %268 = sbr.rel (0) target = $region53
    $region52: #{tpu_custom_call.1} parent=1 // pred_region
      %270 = dma.done [#allocation4], 512
    $region53: #{tpu_custom_call.1} parent=1 // pred_fallthru
      _
    // Predicated region
    $region54: #{tpu_custom_call.1} parent=1 // pred_check
      _
    $region55: #{tpu_custom_call.1} parent=1 // pred_check_branch
      %272 = sbr.rel (0) target = $region57
    $region56: #{tpu_custom_call.1} parent=1 // pred_region
      %274 = dma.done [#allocation13], 128
    $region57: #{tpu_custom_call.1} parent=1 // pred_fallthru
      _
    %275 = vsyncpa [#allocation3], 1
    %276 = vsyncpa [#allocation6], 1
    %277 = vsyncpa [#allocation9], 1
    %278 = vsyncpa [#allocation4], 1
    %279 = vsyncpa [#allocation13], 1

</llo_original>
